<compile_context>
chip_gen: v5e
topology: v5e:2x2
jax: 0.10.0
libtpu: 0.0.40
codegen_flags: <defaults>
</compile_context>

<pallas_src>
import functools

import jax
import jax.numpy as jnp
from jax.experimental import pallas as pl
from jax.experimental.pallas import tpu as pltpu


ACT_DTYPE = jnp.bfloat16   # activation / weight dtype fed to the MXU
LANE = 128                 # TPU lane width


def _pick_tile(dim, preferred, align=128):
    """Largest divisor of `dim` that is <= preferred, preferring `align` multiples."""
    if dim <= preferred:
        return dim
    t = (preferred // align) * align
    while t >= align:
        if dim % t == 0:
            return t
        t -= align
    t = min(preferred, dim)
    while t > 1:
        if dim % t == 0:
            return t
        t -= 1
    return dim


# ----------------------------------------------------------------------------
# Tiled linear:  y = act(x @ w + b)   [optionally fused residual + LayerNorm]
# ----------------------------------------------------------------------------

def _linear_kernel(*refs, activation, fuse_ln, has_residual, ln_eps):
    if fuse_ln:
        if has_residual:
            x_ref, w_ref, b_ref, r_ref, g_ref, bb_ref, o_ref, acc_ref = refs
        else:
            x_ref, w_ref, b_ref, g_ref, bb_ref, o_ref, acc_ref = refs
    else:
        x_ref, w_ref, b_ref, o_ref, acc_ref = refs

    @pl.when(pl.program_id(2) == 0)
    def _():
        acc_ref[...] = jnp.zeros_like(acc_ref)

    acc_ref[...] += jnp.dot(x_ref[...], w_ref[...],
                            preferred_element_type=jnp.float32)

    @pl.when(pl.program_id(2) == pl.num_programs(2) - 1)
    def _():
        y = acc_ref[...] + b_ref[...]            # bias kept in f32
        if activation == "tanh":
            y = jnp.tanh(y)
        elif activation == "gelu":
            # TODO(synk): HF RoBERTa uses exact erf GELU; tanh approx kept for
            # lowering safety (small numeric drift).
            y = jax.nn.gelu(y)
        if fuse_ln:
            if has_residual:
                y = y + r_ref[...].astype(jnp.float32)
            mu = jnp.mean(y, axis=-1, keepdims=True)
            var = jnp.mean(jnp.square(y - mu), axis=-1, keepdims=True)
            y = (y - mu) * jax.lax.rsqrt(var + ln_eps)
            y = y * g_ref[...] + bb_ref[...]
        o_ref[...] = y.astype(o_ref.dtype)


def pallas_linear(x, w, b, activation=None, out_dtype=None,
                  residual=None, ln=None, ln_eps=1e-5,
                  tm=512, tn=512, tk=512):
    """y = act(x @ w + b); if ln=(gamma, beta): y = LayerNorm(y [+ residual]).

    x:(M,K) bf16, w:(K,N) bf16, b:(1,N) f32, gamma/beta:(1,N) f32.
    When `ln` is given the N axis is kept whole (tn = N) so row statistics
    can be computed in the final-k writeback.
    """
    M, K = x.shape
    N = w.shape[1]
    out_dtype = out_dtype or x.dtype
    fuse_ln = ln is not None
    if fuse_ln:
        tn = N                                   # full rows for mean/var
    tm = _pick_tile(M, tm, align=16)             # bf16 sublane packing
    tn = _pick_tile(N, tn, align=128)
    tk = _pick_tile(K, tk, align=128)
    grid = (M // tm, N // tn, K // tk)

    in_specs = [
        pl.BlockSpec((tm, tk), lambda i, j, k: (i, k)),
        pl.BlockSpec((tk, tn), lambda i, j, k: (k, j)),
        pl.BlockSpec((1, tn), lambda i, j, k: (0, j)),
    ]
    inputs = [x, w, b]
    has_residual = fuse_ln and residual is not None
    if fuse_ln:
        if has_residual:
            in_specs.append(pl.BlockSpec((tm, tn), lambda i, j, k: (i, j)))
            inputs.append(residual)
        gamma, beta = ln
        in_specs += [pl.BlockSpec((1, tn), lambda i, j, k: (0, j)),
                     pl.BlockSpec((1, tn), lambda i, j, k: (0, j))]
        inputs += [gamma, beta]

    kernel = functools.partial(_linear_kernel, activation=activation,
                               fuse_ln=fuse_ln, has_residual=has_residual,
                               ln_eps=ln_eps)
    return pl.pallas_call(
        kernel,
        out_shape=jax.ShapeDtypeStruct((M, N), out_dtype),
        grid=grid,
        in_specs=in_specs,
        out_specs=pl.BlockSpec((tm, tn), lambda i, j, k: (i, j)),
        scratch_shapes=[pltpu.VMEM((tm, tn), jnp.float32)],
        compiler_params=pltpu.CompilerParams(
            dimension_semantics=("parallel", "parallel", "arbitrary")),
    )(*inputs)


# ----------------------------------------------------------------------------
# Standalone LayerNorm (embeddings only; post-matmul LNs are fused above)
# ----------------------------------------------------------------------------

def _layernorm_kernel(x_ref, g_ref, b_ref, o_ref, *, eps):
    x = x_ref[...].astype(jnp.float32)
    mu = jnp.mean(x, axis=-1, keepdims=True)
    var = jnp.mean(jnp.square(x - mu), axis=-1, keepdims=True)
    y = (x - mu) * jax.lax.rsqrt(var + eps)
    y = y * g_ref[...] + b_ref[...]
    o_ref[...] = y.astype(o_ref.dtype)


def pallas_layernorm(x, gamma, beta, eps=1e-5, out_dtype=None, tm=512):
    """LayerNorm over last axis of x:(M,D); gamma/beta:(1,D) f32."""
    M, D = x.shape
    out_dtype = out_dtype or x.dtype
    tm = _pick_tile(M, tm, align=16)
    row_spec = pl.BlockSpec((tm, D), lambda i: (i, 0))
    vec_spec = pl.BlockSpec((1, D), lambda i: (0, 0))
    return pl.pallas_call(
        functools.partial(_layernorm_kernel, eps=eps),
        out_shape=jax.ShapeDtypeStruct((M, D), out_dtype),
        grid=(M // tm,),
        in_specs=[row_spec, vec_spec, vec_spec],
        out_specs=row_spec,
        compiler_params=pltpu.CompilerParams(
            dimension_semantics=("parallel",)),
    )(x, gamma, beta)


# ----------------------------------------------------------------------------
# Attention, reading the fused QKV tensor directly and writing merged context
# ----------------------------------------------------------------------------

def _attention_kernel(q_ref, k_ref, v_ref, o_ref, *, dh, hpb):
    # q_ref: (tq, hpb*dh), k_ref/v_ref: (S, hpb*dh); scale folded into wqkv.
    q = q_ref[...]
    k = k_ref[...]
    v = v_ref[...]
    outs = []
    for h in range(hpb):                       # static unroll over head-pair
        sl = slice(h * dh, (h + 1) * dh)
        qs, ks, vs = q[:, sl], k[:, sl], v[:, sl]
        s = jax.lax.dot_general(qs, ks, (((1,), (1,)), ((), ())),
                                preferred_element_type=jnp.float32)   # (tq, S)
        m = jnp.max(s, axis=-1, keepdims=True)
        p = jnp.exp(s - m)                                            # f32
        denom = jnp.sum(p, axis=-1, keepdims=True)
        p = p * pl.reciprocal(denom, approx=True)                     # EUP slot
        outs.append(jnp.dot(p.astype(vs.dtype), vs,
                            preferred_element_type=jnp.float32))
    o_ref[...] = jnp.concatenate(outs, axis=-1).astype(o_ref.dtype)


def pallas_attention_from_qkv(qkv, B, S, Hn, dh, out_dtype=ACT_DTYPE,
                              tq_pref=256):
    """Self-attention from the fused qkv:(B*S, 3D) tensor.

    Grid = (batch, head-group, q-tile).  Each head-group packs 128//dh heads so
    the output block is 128-lane dense; context is written directly in merged
    (B*S, D) layout (head h -> columns [h*dh:(h+1)*dh]).
    """
    D = Hn * dh
    hpb = max(1, LANE // dh)
    while Hn % hpb:
        hpb -= 1
    width = hpb * dh
    nhp = Hn // hpb                       # head groups
    tq = _pick_tile(S, tq_pref, align=8)
    nq = S // tq

    q_spec = pl.BlockSpec((tq, width), lambda b, hp, qi: (b * nq + qi, hp))
    k_spec = pl.BlockSpec((S, width), lambda b, hp, qi: (b, nhp + hp))
    v_spec = pl.BlockSpec((S, width), lambda b, hp, qi: (b, 2 * nhp + hp))
    o_spec = pl.BlockSpec((tq, width), lambda b, hp, qi: (b * nq + qi, hp))

    kernel = functools.partial(_attention_kernel, dh=dh, hpb=hpb)
    return pl.pallas_call(
        kernel,
        out_shape=jax.ShapeDtypeStruct((B * S, D), out_dtype),
        grid=(B, nhp, nq),
        in_specs=[q_spec, k_spec, v_spec],
        out_specs=o_spec,
        compiler_params=pltpu.CompilerParams(
            dimension_semantics=("parallel", "parallel", "parallel")),
    )(qkv, qkv, qkv)


# ----------------------------------------------------------------------------
# Synthetic RoBERTa + SPC head (forward)
# ----------------------------------------------------------------------------

def roberta_spc_forward(params, input_ids, cfg):
    B, S = input_ids.shape
    D, Hn, P = cfg["hidden"], cfg["heads"], cfg["polarities"]
    dh = D // Hn

    # --- embeddings (gather is glue; layernorm is a Pallas kernel, f32 stats) ---
    pos_ids = jnp.arange(S)
    h = (params["word_emb"][input_ids]
         + params["pos_emb"][pos_ids][None, :, :]
         + params["type_emb"][0][None, None, :])
    h = h.reshape(B * S, D)                                   # f32 into LN
    h = pallas_layernorm(h, params["emb_ln_g"], params["emb_ln_b"],
                         out_dtype=ACT_DTYPE)

    # --- transformer layers (post-LN, as in RoBERTa) ---
    for lyr in params["layers"]:
        # fused Q/K/V projection (1/sqrt(dh) already folded into Q weights)
        qkv = pallas_linear(h, lyr["wqkv"], lyr["bqkv"])      # (B*S, 3D) bf16

        # attention reads qkv column windows directly, writes merged (B*S, D)
        ctx = pallas_attention_from_qkv(qkv, B, S, Hn, dh)

        # output projection with fused residual-add + LayerNorm
        h = pallas_linear(ctx, lyr["wo"], lyr["bo"],
                          residual=h, ln=(lyr["ln1_g"], lyr["ln1_b"]))

        # feed-forward (bias + gelu fused into the first matmul;
        # residual + LN fused into the second)
        ff = pallas_linear(h, lyr["w1"], lyr["b1"], activation="gelu")
        h = pallas_linear(ff, lyr["w2"], lyr["b2"],
                          residual=h, ln=(lyr["ln2_g"], lyr["ln2_b"]))

    # --- pooler: dense + tanh on first token (<s> / CLS) ---
    # TODO(synk): fold the B-row token-0 gather into a BlockSpec index_map.
    first_tok = h.reshape(B, S, D)[:, 0, :]                    # (B, D)
    pooler_output = pallas_linear(first_tok, params["pool_w"], params["pool_b"],
                                  activation="tanh")

    # --- Roberta_SPC head: dropout (eval: identity) + dense -> logits ---
    pooler_output1 = pooler_output                             # dropout, eval mode
    # lane-dense classifier: compute into a 128-wide padded output, slice back
    logits_padded = pallas_linear(pooler_output1, params["cls_w_pad"],
                                  params["cls_b_pad"], out_dtype=jnp.float32)
    logits = logits_padded[:, :P]
    return logits, pooler_output.astype(jnp.float32)


# ----------------------------------------------------------------------------
# Deterministic parameter init (weights cast to bf16 once, biases pre-shaped)
# ----------------------------------------------------------------------------

def init_params(key, cfg):
    D, F, V, P, L, Smax = (cfg["hidden"], cfg["ffn"], cfg["vocab"],
                           cfg["polarities"], cfg["layers"], cfg["max_seq"])
    Hn = cfg["heads"]
    dh = D // Hn
    P_pad = ((P + LANE - 1) // LANE) * LANE

    def nrm32(k, shape, std=0.02):
        return std * jax.random.normal(k, shape)

    keys = jax.random.split(key, 8 + L)

    cls_w = nrm32(keys[4], (D, P))
    cls_w_pad = jnp.zeros((D, P_pad), jnp.float32).at[:, :P].set(cls_w)

    params = {
        "word_emb": nrm32(keys[0], (V, D)),
        "pos_emb": nrm32(keys[1], (Smax, D)),
        "type_emb": nrm32(keys[2], (2, D)),
        "emb_ln_g": jnp.ones((1, D), jnp.float32),
        "emb_ln_b": jnp.zeros((1, D), jnp.float32),
        "pool_w": nrm32(keys[3], (D, D)).astype(ACT_DTYPE),
        "pool_b": jnp.zeros((1, D), jnp.float32),
        "cls_w_pad": cls_w_pad.astype(ACT_DTYPE),
        "cls_b_pad": jnp.zeros((1, P_pad), jnp.float32),
        "layers": [],
    }

    scale = 1.0 / (dh ** 0.5)
    for i in range(L):
        lk = jax.random.split(keys[8 + i], 4)
        wqkv = nrm32(lk[0], (D, 3 * D))
        wqkv = wqkv.at[:, :D].multiply(scale)        # fold attention scale into Q
        bqkv = jnp.zeros((1, 3 * D), jnp.float32)    # (zero bias -> no scaling needed)
        params["layers"].append({
            "wqkv": wqkv.astype(ACT_DTYPE),
            "bqkv": bqkv,
            "wo": nrm32(lk[1], (D, D)).astype(ACT_DTYPE),
            "bo": jnp.zeros((1, D), jnp.float32),
            "ln1_g": jnp.ones((1, D), jnp.float32),
            "ln1_b": jnp.zeros((1, D), jnp.float32),
            "w1": nrm32(lk[2], (D, F)).astype(ACT_DTYPE),
            "b1": jnp.zeros((1, F), jnp.float32),
            "w2": nrm32(lk[3], (F, D)).astype(ACT_DTYPE),
            "b2": jnp.zeros((1, D), jnp.float32),
            "ln2_g": jnp.ones((1, D), jnp.float32),
            "ln2_b": jnp.zeros((1, D), jnp.float32),
        })
    return params


# ----------------------------------------------------------------------------
# Main
# ----------------------------------------------------------------------------

if __name__ == "__main__":
    # Small but lane-aligned config (hidden multiple of 128 so attention /
    # classifier output blocks are 128-lane dense even at toy size).
    cfg = dict(hidden=128, heads=4, ffn=256, vocab=100, polarities=3,
               layers=2, max_seq=16)
    B, S = 2, 8

    key = jax.random.PRNGKey(0)
    pkey, ikey = jax.random.split(key)
    params = init_params(pkey, cfg)

    # inputs = (text_bert_indices, bert_segments_ids); segments are unused
    # (the torch forward only passes input_ids to the roberta encoder).
    text_bert_indices = jax.random.randint(ikey, (B, S), 0, cfg["vocab"],
                                           dtype=jnp.int32)
    bert_segments_ids = jnp.zeros((B, S), jnp.int32)  # noqa: F841 (kept for parity)

    logits, pooler_output = roberta_spc_forward(params, text_bert_indices, cfg)
    jax.block_until_ready((logits, pooler_output))

    assert logits.shape == (B, cfg["polarities"])
    assert pooler_output.shape == (B, cfg["hidden"])
    assert bool(jnp.isfinite(logits).all()) and bool(jnp.isfinite(pooler_output).all())
    print("KERNEL_OK")
</pallas_src>

<mosaic_0001>
module attributes {stable_mosaic.version = 11 : i64} {
  func.func @_layernorm_kernel(%arg0: i32, %arg1: memref<16x128xf32, #tpu.memory_space<vmem>>, %arg2: memref<1x128xf32, #tpu.memory_space<vmem>>, %arg3: memref<1x128xf32, #tpu.memory_space<vmem>>, %arg4: memref<16x128xbf16, #tpu.memory_space<vmem>>) attributes {dimension_semantics = [#tpu.dimension_semantics<parallel>], iteration_bounds = array<i64: 1>, scalar_prefetch = 0 : i64, scratch_operands = 0 : i64, tpu.core_type = #tpu.core_type<tc>, window_params = [{transform_indices = @transform_0, window_bounds = array<i64: 16, 128>}, {pipeline_mode = #tpu.pipeline_mode<synchronous>, transform_indices = @transform_1, window_bounds = array<i64: 1, 128>}, {pipeline_mode = #tpu.pipeline_mode<synchronous>, transform_indices = @transform_2, window_bounds = array<i64: 1, 128>}, {transform_indices = @transform_3, window_bounds = array<i64: 16, 128>}]} {
    %c0 = arith.constant 0 : index
    %c0_0 = arith.constant 0 : index
    %0 = vector.load %arg1[%c0, %c0_0] : memref<16x128xf32, #tpu.memory_space<vmem>>, vector<16x128xf32>
    %cst = arith.constant dense<0.000000e+00> : vector<16xf32>
    %1 = vector.multi_reduction <add>, %0, %cst [1] : vector<16x128xf32> to vector<16xf32>
    %2 = vector.shape_cast %1 : vector<16xf32> to vector<16x1xf32>
    %cst_1 = arith.constant 1.280000e+02 : f32
    %3 = vector.broadcast %cst_1 : f32 to vector<16x1xf32>
    %4 = arith.divf %2, %3 : vector<16x1xf32>
    %5 = vector.broadcast %4 : vector<16x1xf32> to vector<16x128xf32>
    %6 = arith.subf %0, %5 : vector<16x128xf32>
    %7 = arith.mulf %6, %6 : vector<16x128xf32>
    %cst_2 = arith.constant dense<0.000000e+00> : vector<16xf32>
    %8 = vector.multi_reduction <add>, %7, %cst_2 [1] : vector<16x128xf32> to vector<16xf32>
    %9 = vector.shape_cast %8 : vector<16xf32> to vector<16x1xf32>
    %cst_3 = arith.constant 1.280000e+02 : f32
    %10 = vector.broadcast %cst_3 : f32 to vector<16x1xf32>
    %11 = arith.divf %9, %10 : vector<16x1xf32>
    %12 = vector.broadcast %4 : vector<16x1xf32> to vector<16x128xf32>
    %13 = arith.subf %0, %12 : vector<16x128xf32>
    %cst_4 = arith.constant 9.99999974E-6 : f32
    %14 = vector.broadcast %cst_4 : f32 to vector<16x1xf32>
    %15 = arith.addf %11, %14 : vector<16x1xf32>
    %16 = math.rsqrt %15 : vector<16x1xf32>
    %17 = vector.broadcast %16 : vector<16x1xf32> to vector<16x128xf32>
    %18 = arith.mulf %13, %17 : vector<16x128xf32>
    %c0_5 = arith.constant 0 : index
    %c0_6 = arith.constant 0 : index
    %19 = vector.load %arg2[%c0_5, %c0_6] : memref<1x128xf32, #tpu.memory_space<vmem>>, vector<1x128xf32>
    %20 = vector.broadcast %19 : vector<1x128xf32> to vector<16x128xf32>
    %21 = arith.mulf %18, %20 : vector<16x128xf32>
    %c0_7 = arith.constant 0 : index
    %c0_8 = arith.constant 0 : index
    %22 = vector.load %arg3[%c0_7, %c0_8] : memref<1x128xf32, #tpu.memory_space<vmem>>, vector<1x128xf32>
    %23 = vector.broadcast %22 : vector<1x128xf32> to vector<16x128xf32>
    %24 = arith.addf %21, %23 : vector<16x128xf32>
    %25 = arith.truncf %24 : vector<16x128xf32> to vector<16x128xbf16>
    %c0_9 = arith.constant 0 : index
    %c0_10 = arith.constant 0 : index
    %26 = vector.load %arg4[%c0_9, %c0_10] : memref<16x128xbf16, #tpu.memory_space<vmem>>, vector<16x128xbf16>
    tpu.vector_store %arg4[%c0_9, %c0_10], %25 {strides = array<i32>} : memref<16x128xbf16, #tpu.memory_space<vmem>>, vector<16x128xbf16>,
    return
  }
  func.func @transform_0(%arg0: i32) -> (i32, i32) {
    %c0_i32 = arith.constant 0 : i32
    %c0_i32_0 = arith.constant 0 : i32
    return %arg0, %c0_i32 : i32, i32
  }
  func.func @transform_1(%arg0: i32) -> (i32, i32) {
    %c0_i32 = arith.constant 0 : i32
    %c0_i32_0 = arith.constant 0 : i32
    %c0_i32_1 = arith.constant 0 : i32
    return %c0_i32, %c0_i32_0 : i32, i32
  }
  func.func @transform_2(%arg0: i32) -> (i32, i32) {
    %c0_i32 = arith.constant 0 : i32
    %c0_i32_0 = arith.constant 0 : i32
    %c0_i32_1 = arith.constant 0 : i32
    return %c0_i32, %c0_i32_0 : i32, i32
  }
  func.func @transform_3(%arg0: i32) -> (i32, i32) {
    %c0_i32 = arith.constant 0 : i32
    %c0_i32_0 = arith.constant 0 : i32
    return %arg0, %c0_i32 : i32, i32
  }
}

</mosaic_0001>

<llo_original>
// kernel: tpu_custom_call.1
$region0: #{tpu_custom_call.1}
  #allocation0 [shape = 'u32[]', space=smem, size = 0x4, offset = 0x4, fixed_abs, tag = 'smem constant byte address 0x4 - core index']
  #allocation1 [shape = 'u32[72,128]{1,0:T(1,128)}', space=vmem, size = 0x9000, scoped, tag = 'internal scratch']
  %s0 = inlined_call_operand.hbm [shape: f32[16,128], index: 0, kind: input, shape index: {}]
  %s1 = inlined_call_operand.hbm [shape: f32[1,128], index: 1, kind: input, shape index: {}]
  %s2 = inlined_call_operand.vmem [shape: f32[1,128], index: 2, kind: input, shape index: {}]
  %s3 = inlined_call_operand.hbm [shape: bf16[16,128], index: 3, kind: output, shape index: {}]
  %s4 = sld [smem:[#allocation0]]
  $region30: #{tpu_custom_call.1} parent=0
    _
  %s6 = ssub.s32 1, %s4
  %s7 = scalar_select 0, %s6, %s4
  $region1: #{tpu_custom_call.1} parent=0
    #allocation2 [shape = 'u8[8192]{0}', space=vmem, size = 0x2000, scoped, tag = 'input window, operand 0, single buffered']
    #allocation3 [shape = 's32[1]{0}', space=sflag, size = 0x4, scoped, tag = 'scoped memory for tpu_custom_call.1']
    #allocation4 [shape = 's32[1]{0}', space=sflag, size = 0x4, scoped, tag = 'scoped memory for tpu_custom_call.1']
    #allocation5 [shape = 'u8[512]{0}', space=vmem, size = 0x400, scoped, tag = 'input window, operand 1, single buffered']
    #allocation6 [shape = 's32[1]{0}', space=sflag, size = 0x4, scoped, tag = 'scoped memory for tpu_custom_call.1']
    #allocation7 [shape = 'u8[4096]{0}', space=vmem, size = 0x1000, scoped, tag = 'output window, operand 0, single buffered']
    %8 = vsyncpa [#allocation3], 0
    %9 = vsyncpa [#allocation6], 0
    %10 = vsyncpa [#allocation4], 0
    // Predicated region
    $region2: #{tpu_custom_call.1} parent=1 // pred_check
      _
    $region3: #{tpu_custom_call.1} parent=1 // pred_check_branch
      %12 = sbr.rel (0) target = $region5
    $region4: #{tpu_custom_call.1} parent=1 // pred_region
      %14 = vsyncadd [#allocation3], 0
      %s15 = sshll.u32 %s0, 4
      %s16 = int_to_ptr.hbm [resolvable:$true] %s15
      %s17 = sshll.u32 [#allocation2], 4
      %s18 = int_to_ptr.vmem [resolvable:$true] %s17
      %23 = dma.hbm_to_vmem [thread:$0]  %s16, 256, %s18, [#allocation3], 128, 128, 8
    $region5: #{tpu_custom_call.1} parent=1 // pred_fallthru
      _
    // Predicated region
    $region6: #{tpu_custom_call.1} parent=1 // pred_check
      _
    $region7: #{tpu_custom_call.1} parent=1 // pred_check_branch
      %25 = sbr.rel (0) target = $region9
    $region8: #{tpu_custom_call.1} parent=1 // pred_region
      %27 = vsyncadd [#allocation6], 0
      %s29 = sshll.u32 %s1, 4
      %s30 = int_to_ptr.hbm [resolvable:$true] %s29
      %s31 = sshll.u32 [#allocation5], 4
      %s32 = int_to_ptr.vmem [resolvable:$true] %s31
      %34 = dma.hbm_to_vmem [thread:$0]  %s30, 16, %s32, [#allocation6]
    $region9: #{tpu_custom_call.1} parent=1 // pred_fallthru
      _
    // Predicated region
    $region10: #{tpu_custom_call.1} parent=1 // pred_check
      _
    $region11: #{tpu_custom_call.1} parent=1 // pred_check_branch
      %36 = sbr.rel (0) target = $region13
    $region12: #{tpu_custom_call.1} parent=1 // pred_region
      _
    $region13: #{tpu_custom_call.1} parent=1 // pred_fallthru
      _
    // Predicated region
    $region14: #{tpu_custom_call.1} parent=1 // pred_check
      _
    $region15: #{tpu_custom_call.1} parent=1 // pred_check_branch
      %38 = sbr.rel (0) target = $region17
    $region16: #{tpu_custom_call.1} parent=1 // pred_region
      %40 = dma.done [#allocation3], 256
    $region17: #{tpu_custom_call.1} parent=1 // pred_fallthru
      _
    // Predicated region
    $region18: #{tpu_custom_call.1} parent=1 // pred_check
      _
    $region19: #{tpu_custom_call.1} parent=1 // pred_check_branch
      %42 = sbr.rel (0) target = $region21
    $region20: #{tpu_custom_call.1} parent=1 // pred_region
      %44 = dma.done [#allocation6], 16
    $region21: #{tpu_custom_call.1} parent=1 // pred_fallthru
      _
    %v45 = vld [vmem:[#allocation2] sm:$0xff]
    %v46 = vld [vmem:[#allocation2 + $0x8] sm:$0xff]
    %47 = vadd.xlane.f32.xlu0 %v45
    %v48 = vpop.xlane.xlu0 %47
    %49 = vadd.xlane.f32.xlu0 %v46
    %v50 = vpop.xlane.xlu0 %49
    %v51 = vrcp.pop 128.0
    %v52 = vmul.f32 128.0, %v51
    %v53 = vsub.f32 1.0, %v52
    %v54 = vmul.f32 %v51, %v53
    %v55 = vadd.f32 %v51, %v54
    %vm56 = vweird.f32 %v51
    %v57 = vsel %vm56, %v51, %v55
    %v58 = vmul.f32 %v48, %v57
    %v59 = vmul.f32 %v50, %v57
    %v60 = vsub.f32 %v45, %v58
    %v61 = vsub.f32 %v46, %v59
    %v62 = vmul.f32 %v60, %v60
    %v63 = vmul.f32 %v61, %v61
    %64 = vadd.xlane.f32.xlu0 %v62
    %v65 = vpop.xlane.xlu0 %64
    %66 = vadd.xlane.f32.xlu0 %v63
    %v67 = vpop.xlane.xlu0 %66
    %v68 = vmul.f32 %v65, %v57
    %v69 = vmul.f32 %v67, %v57
    %v70 = vadd.f32 %v68, 1e-05
    %v71 = vadd.f32 %v69, 1e-05
    %v72 = vrsqrt.pop %v70
    %v73 = vmul.f32 %v72, %v70
    %v74 = vmul.f32 %v73, %v72
    %v75 = vmul.f32 0.5, %v74
    %v76 = vsub.f32 1.5, %v75
    %v77 = vmul.f32 %v72, %v76
    %vm78 = vweird.f32 %v70
    %vm79 = vweird.f32 %v72
    %vm80 = vmor %vm78, %vm79
    %v81 = vsel %vm80, %v72, %v77
    %v82 = vrsqrt.pop %v71
    %v83 = vmul.f32 %v82, %v71
    %v84 = vmul.f32 %v83, %v82
    %v85 = vmul.f32 0.5, %v84
    %v86 = vsub.f32 1.5, %v85
    %v87 = vmul.f32 %v82, %v86
    %vm88 = vweird.f32 %v71
    %vm89 = vweird.f32 %v82
    %vm90 = vmor %vm88, %vm89
    %v91 = vsel %vm90, %v82, %v87
    %v92 = vmul.f32 %v60, %v81
    %v93 = vmul.f32 %v61, %v91
    %v94 = vld [vmem:[#allocation5] sm:$0x1]
    %v96 = vperm.slane %v94, 0
    %v98 = vmul.f32 %v92, %v96
    %v99 = vmul.f32 %v93, %v96
    %v100 = vld [vmem:[%s2] sm:$0x1]
    %v102 = vperm.slane %v100, 0
    %v104 = vadd.f32 %v98, %v102
    %v105 = vadd.f32 %v99, %v102
    %v106 = vpack.c.bf16 %v104, %v104
    %v107 = vpack.c.bf16 %v105, %v105
    %108 = vst [vmem:[#allocation7] sm:$0xf] %v106
    %109 = vst [vmem:[#allocation7 + $0x4] sm:$0xf] %v107
    // Predicated region
    $region22: #{tpu_custom_call.1} parent=1 // pred_check
      _
    $region23: #{tpu_custom_call.1} parent=1 // pred_check_branch
      %111 = sbr.rel (0) target = $region25
    $region24: #{tpu_custom_call.1} parent=1 // pred_region
      %113 = vsyncadd [#allocation4], 0
      %s114 = sshll.u32 [#allocation7], 4
      %s115 = int_to_ptr.vmem [resolvable:$true] %s114
      %s116 = sshll.u32 %s3, 4
      %s117 = int_to_ptr.hbm [resolvable:$true] %s116
      %122 = dma.vmem_to_hbm [thread:$0]  %s115, 128, %s117, [#allocation4], 64, 64, 4
    $region25: #{tpu_custom_call.1} parent=1 // pred_fallthru
      _
    // Predicated region
    $region26: #{tpu_custom_call.1} parent=1 // pred_check
      _
    $region27: #{tpu_custom_call.1} parent=1 // pred_check_branch
      %124 = sbr.rel (0) target = $region29
    $region28: #{tpu_custom_call.1} parent=1 // pred_region
      %126 = dma.done [#allocation4], 128
    $region29: #{tpu_custom_call.1} parent=1 // pred_fallthru
      _
    %127 = vsyncpa [#allocation3], 1
    %128 = vsyncpa [#allocation6], 1
    %129 = vsyncpa [#allocation4], 1

</llo_original>
